<compile_context>
chip_gen: v7x
topology: tpu7x:2x2x1
jax: 0.10.0
libtpu: 0.0.40
codegen_flags: <defaults>
</compile_context>

<pallas_src>
import functools

import jax
import jax.numpy as jnp
from jax import lax
from jax.experimental import pallas as pl
from jax.experimental.pallas import tpu as pltpu

_LANES = 128


def _focal_loss_kernel(pred_ref, target_ref, out_ref, *,
                       gamma, tiles_per_split, tile_rows, n_valid, need_mask):
    k = pl.program_id(1)

    # Output block for this split is resident across the reduction axis:
    # zero it on the first tile, accumulate on every tile.
    @pl.when(k == 0)
    def _():
        out_ref[...] = jnp.zeros_like(out_ref)

    p = pred_ref[...].astype(jnp.float32)
    t = target_ref[...].astype(jnp.float32)

    probs = jax.nn.sigmoid(p)
    pt = jnp.clip(probs, 0.0001, 0.999)          # exact clamp semantics
    one_m_pt = 1.0 - pt
    log_pt = jnp.log(pt)
    log_1m_pt = jnp.log(one_m_pt)

    g = float(gamma)
    if g == int(g) and 0 <= int(g) <= 8:
        # Integer gamma: pure VPU multiplies, no transcendentals.
        gi = int(g)

        def ipow(x):
            if gi == 0:
                return jnp.ones_like(x)
            r = x
            for _ in range(gi - 1):
                r = r * x
            return r

        w_pos = ipow(one_m_pt)                   # (1 - pt)^gamma
        w_neg = ipow(pt)                         # pt^gamma
    else:
        # Non-integer gamma: reuse the logs we already have (2 EUP exps),
        # instead of jnp.power's exp(g*log(x)) per operand (4 EUP ops).
        w_pos = jnp.exp(g * log_1m_pt)
        w_neg = jnp.exp(g * log_pt)

    loss = -w_pos * t * log_pt - w_neg * (1.0 - t) * log_1m_pt

    if need_mask:
        # Zero out padded elements (padding only exists at the global tail).
        blk = pl.program_id(0) * tiles_per_split + k
        row = lax.broadcasted_iota(jnp.int32, loss.shape, 0)
        lane = lax.broadcasted_iota(jnp.int32, loss.shape, 1)
        gid = blk * (tile_rows * _LANES) + row * _LANES + lane
        loss = jnp.where(gid < n_valid, loss, 0.0)

    # Fold (tile_rows, 128) -> (8, 128) with cheap cross-vreg VPU adds and
    # accumulate into the resident output block. The expensive cross-lane
    # reduce happens exactly once, outside the kernel.
    partial = loss.reshape(tile_rows // 8, 8, _LANES).sum(axis=0)
    out_ref[...] += partial


def focal_loss(pred, target, gamma=2.0, max_tile_rows=512):
    """Pallas TPU focal loss (mean). pred/target: 1-D float arrays, equal length."""
    assert pred.shape == target.shape and pred.ndim == 1
    b = int(pred.shape[0])

    rows = pl.cdiv(b, _LANES)
    # Tile rows: multiple of 8, capped at max_tile_rows (512*128*4B = 256 KiB/buf).
    tile_rows = min(max_tile_rows, ((rows + 7) // 8) * 8)
    tile_rows = max(8, (tile_rows // 8) * 8)

    total_tiles = pl.cdiv(rows, tile_rows)
    # Split tiles across (up to) 2 TensorCores when evenly possible (v7x win,
    # harmless on single-TC v5e/v6e).
    num_splits = 2 if (total_tiles >= 2 and total_tiles % 2 == 0) else 1
    tiles_per_split = total_tiles // num_splits

    padded_rows = total_tiles * tile_rows
    padded = padded_rows * _LANES
    need_mask = padded != b

    def prep(x):
        x = x.astype(jnp.float32).reshape(-1)
        if need_mask:
            x = jnp.pad(x, (0, padded - b))
        return x.reshape(padded_rows, _LANES)

    pred2d = prep(pred)
    target2d = prep(target)

    kernel = functools.partial(
        _focal_loss_kernel,
        gamma=float(gamma),
        tiles_per_split=tiles_per_split,
        tile_rows=tile_rows,
        n_valid=b,
        need_mask=need_mask,
    )

    in_map = lambda s, k: (s * tiles_per_split + k, 0)

    partials = pl.pallas_call(
        kernel,
        out_shape=jax.ShapeDtypeStruct((num_splits * 8, _LANES), jnp.float32),
        grid_spec=pltpu.PrefetchScalarGridSpec(
            num_scalar_prefetch=0,
            grid=(num_splits, tiles_per_split),
            in_specs=[
                pl.BlockSpec((tile_rows, _LANES), in_map),
                pl.BlockSpec((tile_rows, _LANES), in_map),
            ],
            out_specs=pl.BlockSpec((8, _LANES), lambda s, k: (s, 0)),
        ),
        compiler_params=pltpu.CompilerParams(
            dimension_semantics=("parallel", "arbitrary")),
    )(pred2d, target2d)

    inv_n = 1.0 / float(b)   # precomputed reciprocal; avoids an in-kernel divide
    return jnp.sum(partials) * jnp.float32(inv_n)


def _focal_loss_ref(pred, target, gamma=2.0):
    probs = jax.nn.sigmoid(pred.astype(jnp.float32))
    pt = jnp.clip(probs, 0.0001, 0.999)
    loss = (-((1.0 - pt) ** gamma) * target * jnp.log(pt)
            - (pt ** gamma) * (1.0 - target) * jnp.log(1.0 - pt))
    return jnp.mean(loss)


if __name__ == "__main__":
    key = jax.random.PRNGKey(0)
    k1, k2 = jax.random.split(key)

    # Batch of per-example logits / binary targets (matches module's 1-D spec).
    B = 1024
    pred = jax.random.normal(k1, (B,), dtype=jnp.float32) * 2.0
    target = jax.random.bernoulli(k2, p=0.3, shape=(B,)).astype(jnp.float32)

    out = jax.block_until_ready(focal_loss(pred, target, gamma=2.0))
    ref = _focal_loss_ref(pred, target, gamma=2.0)
    assert jnp.allclose(out, ref, rtol=1e-5, atol=1e-6), (out, ref)

    # Ragged case (exercises padding + in-kernel mask path).
    B2 = 1000
    pred2 = pred[:B2]
    target2 = target[:B2]
    out2 = jax.block_until_ready(focal_loss(pred2, target2, gamma=2.0))
    ref2 = _focal_loss_ref(pred2, target2, gamma=2.0)
    assert jnp.allclose(out2, ref2, rtol=1e-5, atol=1e-6), (out2, ref2)

    print("KERNEL_OK")
</pallas_src>

<mosaic_0001>
module attributes {stable_mosaic.version = 11 : i64} {
  func.func @_focal_loss_kernel(%arg0: i32, %arg1: i32, %arg2: memref<8x128xf32, #tpu.memory_space<vmem>>, %arg3: memref<8x128xf32, #tpu.memory_space<vmem>>, %arg4: memref<8x128xf32, #tpu.memory_space<vmem>>) attributes {dimension_semantics = [#tpu.dimension_semantics<parallel>, #tpu.dimension_semantics<arbitrary>], iteration_bounds = array<i64: 1, 1>, scalar_prefetch = 0 : i64, scratch_operands = 0 : i64, tpu.core_type = #tpu.core_type<tc>, window_params = [{transform_indices = @transform_0, window_bounds = array<i64: 8, 128>}, {transform_indices = @transform_1, window_bounds = array<i64: 8, 128>}, {transform_indices = @transform_2, window_bounds = array<i64: 8, 128>}]} {
    %c0_i32 = arith.constant 0 : i32
    %0 = arith.cmpi eq, %arg1, %c0_i32 : i32
    %1 = arith.extui %0 : i1 to i32
    %c0_i32_0 = arith.constant 0 : i32
    %2 = arith.cmpi ne, %1, %c0_i32_0 : i32
    scf.if %2 {
      %cst_14 = arith.constant 0.000000e+00 : f32
      %34 = vector.broadcast %cst_14 : f32 to vector<8x128xf32>
      %c0_15 = arith.constant 0 : index
      %c0_16 = arith.constant 0 : index
      %35 = vector.load %arg4[%c0_15, %c0_16] : memref<8x128xf32, #tpu.memory_space<vmem>>, vector<8x128xf32>
      tpu.vector_store %arg4[%c0_15, %c0_16], %34 {strides = array<i32>} : memref<8x128xf32, #tpu.memory_space<vmem>>, vector<8x128xf32>,
    } else {
    }
    %c0 = arith.constant 0 : index
    %c0_1 = arith.constant 0 : index
    %3 = vector.load %arg2[%c0, %c0_1] : memref<8x128xf32, #tpu.memory_space<vmem>>, vector<8x128xf32>
    %c0_2 = arith.constant 0 : index
    %c0_3 = arith.constant 0 : index
    %4 = vector.load %arg3[%c0_2, %c0_3] : memref<8x128xf32, #tpu.memory_space<vmem>>, vector<8x128xf32>
    %5 = arith.negf %3 : vector<8x128xf32>
    %6 = math.exp %5 : vector<8x128xf32>
    %cst = arith.constant 1.000000e+00 : f32
    %7 = vector.broadcast %cst : f32 to vector<8x128xf32>
    %8 = arith.addf %7, %6 : vector<8x128xf32>
    %9 = arith.divf %7, %8 : vector<8x128xf32>
    %cst_4 = arith.constant 9.99999974E-5 : f32
    %cst_5 = arith.constant 9.990000e-01 : f32
    %10 = vector.broadcast %cst_4 : f32 to vector<8x128xf32>
    %11 = arith.maximumf %10, %9 : vector<8x128xf32>
    %12 = vector.broadcast %cst_5 : f32 to vector<8x128xf32>
    %13 = arith.minimumf %12, %11 : vector<8x128xf32>
    %cst_6 = arith.constant 1.000000e+00 : f32
    %14 = vector.broadcast %cst_6 : f32 to vector<8x128xf32>
    %15 = arith.subf %14, %13 : vector<8x128xf32>
    %16 = math.log %13 : vector<8x128xf32>
    %17 = math.log %15 : vector<8x128xf32>
    %18 = arith.mulf %15, %15 : vector<8x128xf32>
    %19 = arith.mulf %13, %13 : vector<8x128xf32>
    %cst_7 = arith.constant 0.000000e+00 : f32
    %20 = vector.broadcast %cst_7 : f32 to vector<8x128xf32>
    %21 = arith.subf %20, %18 : vector<8x128xf32>
    %22 = arith.mulf %21, %4 : vector<8x128xf32>
    %23 = arith.mulf %22, %16 : vector<8x128xf32>
    %cst_8 = arith.constant 1.000000e+00 : f32
    %24 = vector.broadcast %cst_8 : f32 to vector<8x128xf32>
    %25 = arith.subf %24, %4 : vector<8x128xf32>
    %26 = arith.mulf %19, %25 : vector<8x128xf32>
    %27 = arith.mulf %26, %17 : vector<8x128xf32>
    %28 = arith.subf %23, %27 : vector<8x128xf32>
    %29 = vector.shape_cast %28 : vector<8x128xf32> to vector<1x8x128xf32>
    %cst_9 = arith.constant dense<0.000000e+00> : vector<8x128xf32>
    %30 = vector.multi_reduction <add>, %29, %cst_9 [0] : vector<1x8x128xf32> to vector<8x128xf32>
    %c0_10 = arith.constant 0 : index
    %c0_11 = arith.constant 0 : index
    %31 = vector.load %arg4[%c0_10, %c0_11] : memref<8x128xf32, #tpu.memory_space<vmem>>, vector<8x128xf32>
    %32 = arith.addf %31, %30 : vector<8x128xf32>
    %c0_12 = arith.constant 0 : index
    %c0_13 = arith.constant 0 : index
    %33 = vector.load %arg4[%c0_12, %c0_13] : memref<8x128xf32, #tpu.memory_space<vmem>>, vector<8x128xf32>
    tpu.vector_store %arg4[%c0_12, %c0_13], %32 {strides = array<i32>} : memref<8x128xf32, #tpu.memory_space<vmem>>, vector<8x128xf32>,
    return
  }
  func.func @transform_0(%arg0: i32, %arg1: i32) -> (i32, i32) {
    %c1_i32 = arith.constant 1 : i32
    %0 = arith.muli %arg0, %c1_i32 : i32
    %1 = arith.addi %0, %arg1 : i32
    %c0_i32 = arith.constant 0 : i32
    %c0_i32_0 = arith.constant 0 : i32
    return %1, %c0_i32 : i32, i32
  }
  func.func @transform_1(%arg0: i32, %arg1: i32) -> (i32, i32) {
    %c1_i32 = arith.constant 1 : i32
    %0 = arith.muli %arg0, %c1_i32 : i32
    %1 = arith.addi %0, %arg1 : i32
    %c0_i32 = arith.constant 0 : i32
    %c0_i32_0 = arith.constant 0 : i32
    return %1, %c0_i32 : i32, i32
  }
  func.func @transform_2(%arg0: i32, %arg1: i32) -> (i32, i32) {
    %c0_i32 = arith.constant 0 : i32
    %c0_i32_0 = arith.constant 0 : i32
    return %arg0, %c0_i32 : i32, i32
  }
}

</mosaic_0001>

<llo_original>
// kernel: tpu_custom_call.1
$region0: #{tpu_custom_call.1}
  #allocation0 [shape = 'u32[]', space=smem, size = 0x4, offset = 0x4, fixed_abs, tag = 'smem constant byte address 0x4 - core index']
  #allocation1 [shape = 'u32[144,128]{1,0:T(1,128)}', space=vmem, size = 0x12000, scoped, tag = 'internal scratch']
  %s0 = inlined_call_operand.hbm [shape: f32[8,128], index: 0, kind: input, shape index: {}]
  %s1 = inlined_call_operand.hbm [shape: f32[8,128], index: 1, kind: input, shape index: {}]
  %s2 = inlined_call_operand.hbm [shape: f32[8,128], index: 2, kind: output, shape index: {}]
  %s3 = sld [smem:[#allocation0]]
  $region30: #{tpu_custom_call.1} parent=0
    _
  %s5 = ssub.s32 1, %s3
  %s6 = scalar_select 0, %s5, %s3
  $region1: #{tpu_custom_call.1} parent=0
    #allocation2 [shape = 'u8[4096]{0}', space=vmem, size = 0x1000, scoped, tag = 'input window, operand 0, single buffered']
    #allocation3 [shape = 's32[1]{0}', space=sflag, size = 0x4, scoped, tag = 'scoped memory for tpu_custom_call.1']
    #allocation4 [shape = 's32[1]{0}', space=sflag, size = 0x4, scoped, tag = 'scoped memory for tpu_custom_call.1']
    #allocation5 [shape = 'u8[4096]{0}', space=vmem, size = 0x1000, scoped, tag = 'input window, operand 1, single buffered']
    #allocation6 [shape = 's32[1]{0}', space=sflag, size = 0x4, scoped, tag = 'scoped memory for tpu_custom_call.1']
    #allocation7 [shape = 'u8[4096]{0}', space=vmem, size = 0x1000, scoped, tag = 'output window, operand 0, single buffered']
    %7 = vsyncpa [#allocation3], 0
    %8 = vsyncpa [#allocation6], 0
    %9 = vsyncpa [#allocation4], 0
    // Predicated region
    $region2: #{tpu_custom_call.1} parent=1 // pred_check
      _
    $region3: #{tpu_custom_call.1} parent=1 // pred_check_branch
      %11 = sbr.rel (0) target = $region5
    $region4: #{tpu_custom_call.1} parent=1 // pred_region
      %s12 = sadd.s32 0, 0
      %s14 = ssub.s32 128, 128
      %15 = vsyncadd [#allocation3], %s14
      %s16 = smul.addr %s12, 128
      %s17 = scalar_lea.hbm %s0, %s16
      %s19 = sshll.u32 [#allocation2], 4
      %s20 = int_to_ptr.vmem [resolvable:$true] %s19
      %22 = dma.hbm_to_vmem [thread:$0]  %s17, 128, %s20, [#allocation3]
    $region5: #{tpu_custom_call.1} parent=1 // pred_fallthru
      _
    // Predicated region
    $region6: #{tpu_custom_call.1} parent=1 // pred_check
      _
    $region7: #{tpu_custom_call.1} parent=1 // pred_check_branch
      %24 = sbr.rel (0) target = $region9
    $region8: #{tpu_custom_call.1} parent=1 // pred_region
      %s25 = sadd.s32 0, 0
      %s27 = ssub.s32 128, 128
      %28 = vsyncadd [#allocation6], %s27
      %s29 = smul.addr %s25, 128
      %s30 = scalar_lea.hbm %s1, %s29
      %s32 = sshll.u32 [#allocation5], 4
      %s33 = int_to_ptr.vmem [resolvable:$true] %s32
      %35 = dma.hbm_to_vmem [thread:$0]  %s30, 128, %s33, [#allocation6]
    $region9: #{tpu_custom_call.1} parent=1 // pred_fallthru
      _
    // Predicated region
    $region10: #{tpu_custom_call.1} parent=1 // pred_check
      _
    $region11: #{tpu_custom_call.1} parent=1 // pred_check_branch
      %37 = sbr.rel (0) target = $region13
    $region12: #{tpu_custom_call.1} parent=1 // pred_region
      %38 = dma.done [#allocation3], 128
    $region13: #{tpu_custom_call.1} parent=1 // pred_fallthru
      _
    // Predicated region
    $region14: #{tpu_custom_call.1} parent=1 // pred_check
      _
    $region15: #{tpu_custom_call.1} parent=1 // pred_check_branch
      %40 = sbr.rel (0) target = $region17
    $region16: #{tpu_custom_call.1} parent=1 // pred_region
      %41 = dma.done [#allocation6], 128
    $region17: #{tpu_custom_call.1} parent=1 // pred_fallthru
      _
    %s42 = sadd.s32 0, 0
    %s43 = sadd.s32 0, 0
    %p44 = scmp.eq.s32.totalorder 0, 0
    // Predicated region
    $region18: #{tpu_custom_call.1} parent=1 // pred_check
      %p45 = pneg %p44
    $region19: #{tpu_custom_call.1} parent=1 // pred_check_branch
      %47 = sbr.rel (%p45) target = $region21
    $region20: #{tpu_custom_call.1} parent=1 // pred_region
      %48 = vst [vmem:[#allocation7] sm:$0xff] 0.0
    $region21: #{tpu_custom_call.1} parent=1 // pred_fallthru
      _
    %v49 = vld [vmem:[#allocation2] sm:$0xff]
    %v50 = vld [vmem:[#allocation5] sm:$0xff]
    %v51 = vxor.u32 %v49, 2147483648
    %v52 = vmul.f32 %v51, 1.442695
    %v53 = vpow.pop %v52
    %v54 = vadd.f32 %v53, 1.0
    %v55 = vrcp.pop %v54
    %v56 = vmul.f32 1.0, %v55
    %v57 = vmax.f32 %v56, 0.0001
    %v58 = vmin.f32 %v57, 0.999
    %v59 = vsub.f32 1.0, %v58
    %v60 = vlog2.pop %v58
    %v61 = vmul.f32 %v60, 0.6931472
    %v62 = vlog2.pop %v59
    %v63 = vmul.f32 %v62, 0.6931472
    %v64 = vmul.f32 %v59, %v59
    %v65 = vmul.f32 %v58, %v58
    %v66 = vsub.f32 0.0, %v64
    %v67 = vmul.f32 %v66, %v50
    %v68 = vmul.f32 %v67, %v61
    %v69 = vsub.f32 1.0, %v50
    %v70 = vmul.f32 %v65, %v69
    %v71 = vmul.f32 %v70, %v63
    %v72 = vsub.f32 %v68, %v71
    %v73 = vadd.f32 %v72, 0.0
    %v74 = vld [vmem:[#allocation7] sm:$0xff]
    %v75 = vadd.f32 %v74, %v73
    %76 = vst [vmem:[#allocation7] sm:$0xff] %v75
    // Predicated region
    $region22: #{tpu_custom_call.1} parent=1 // pred_check
      _
    $region23: #{tpu_custom_call.1} parent=1 // pred_check_branch
      %78 = sbr.rel (0) target = $region25
    $region24: #{tpu_custom_call.1} parent=1 // pred_region
      %s80 = ssub.s32 128, 128
      %81 = vsyncadd [#allocation4], %s80
      %s83 = sshll.u32 [#allocation7], 4
      %s84 = int_to_ptr.vmem [resolvable:$true] %s83
      %86 = dma.vmem_to_hbm [thread:$0]  %s84, 128, %s2, [#allocation4]
    $region25: #{tpu_custom_call.1} parent=1 // pred_fallthru
      _
    // Predicated region
    $region26: #{tpu_custom_call.1} parent=1 // pred_check
      _
    $region27: #{tpu_custom_call.1} parent=1 // pred_check_branch
      %88 = sbr.rel (0) target = $region29
    $region28: #{tpu_custom_call.1} parent=1 // pred_region
      %89 = dma.done [#allocation4], 128
    $region29: #{tpu_custom_call.1} parent=1 // pred_fallthru
      _
    %90 = vsyncpa [#allocation3], 1
    %91 = vsyncpa [#allocation6], 1
    %92 = vsyncpa [#allocation4], 1

</llo_original>
